<compile_context>
chip_gen: v6e
topology: v6e:2x2x1
jax: 0.10.0
libtpu: 0.0.40
codegen_flags: <defaults>
</compile_context>

<pallas_src>
import functools
import math

import jax
import jax.numpy as jnp
from jax import lax
from jax.experimental import pallas as pl
from jax.experimental.pallas import tpu as pltpu

# Model hyperparameters (mirror CNNBlock.__init__ defaults).
IN_CH = 1
MID_CH = 12
KSIZE = 3          # conv kernel size
POOL_K = 4
POOL_S = 2         # kernel layout assumes pool stride 2 (even/odd phase split)
# TODO(synk): the module's conv `stride` argument is fixed at its default (1) here.

LANE = 128


def _cnn_block_kernel(xe_ref, xo_ref, p_ref, o_ref, *, c_in, ksize, w2_stride):
    """conv1 -> ReLU -> conv2 -> ReLU -> maxpool(4, 2), in even/odd phase form.

    xe_ref/xo_ref: (1, C_in, W)  even / odd lanes of the folded batch slab
    p_ref        : (C_mid, P)    packed [w2_k @ k*128 | w1_k | b1 | b2]
    o_ref        : (1, C_mid, W) lane-dense pooled slab (first L_pool cols of
                                 each length-L/2 segment are the real outputs)
    """
    K = ksize
    C_mid = p_ref.shape[0]
    W0 = xe_ref.shape[-1]                     # per-phase slab width (== W_out)
    W_out = o_ref.shape[-1]

    dk = K // 2
    W1 = W0 - dk                              # conv1 phase width
    W2 = W1 - dk                              # conv2 phase width
    W3 = W2 - (POOL_K - 1) // 2               # pooled (valid prefix) width

    P = p_ref[...]
    w1_off = K * w2_stride
    b_off = w1_off + K * c_in
    # Hoisted, lane-aligned weight views + bias columns.
    w2k = [P[:, k * w2_stride:k * w2_stride + C_mid] for k in range(K)]
    w1k = [P[:, w1_off + k * c_in:w1_off + (k + 1) * c_in] for k in range(K)]
    b1c = P[:, b_off:b_off + 1]               # (C_mid, 1)
    b2c = P[:, b_off + 1:b_off + 2]           # (C_mid, 1)

    x_ph = (xe_ref[0], xo_ref[0])             # each (C_in, W0)

    def conv_relu(src_ph, wk, bias, phi, width):
        # out_phi[h] = relu(bias + sum_k w[k] * src[(phi+k)%2][h + (phi+k)//2])
        acc = bias
        for k in range(K):
            src = src_ph[(phi + k) % 2]
            off = (phi + k) // 2
            piece = src[:, off:off + width]
            if wk[k].shape[1] == 1:
                acc = acc + wk[k] * piece      # VPU outer product (C_in == 1)
            else:
                acc = acc + jnp.dot(wk[k], piece,
                                    preferred_element_type=jnp.float32)
            del piece
        return jnp.maximum(acc, 0.0)

    # conv1 + ReLU, both output phases.
    c1 = tuple(conv_relu(x_ph, w1k, b1c, phi, W1) for phi in (0, 1))
    # conv2 + ReLU as K accumulated MXU matmuls per phase (no axis-0 concat).
    c2 = tuple(conv_relu(c1, w2k, b2c, phi, W2) for phi in (0, 1))

    # MaxPool1d(POOL_K, stride=2): pooled[p] = max_t c2[(t%2)][p + t//2],
    # reduced as a pairwise max tree.
    vals = [c2[t % 2][:, t // 2:t // 2 + W3] for t in range(POOL_K)]
    while len(vals) > 1:
        nxt = [jnp.maximum(vals[i], vals[i + 1])
               for i in range(0, len(vals) - 1, 2)]
        if len(vals) % 2:
            nxt.append(vals[-1])
        vals = nxt
    pooled = vals[0]                           # (C_mid, W3)

    o_ref[0, :, :W3] = pooled.astype(o_ref.dtype)
    if W3 < W_out:
        # Trailing per-segment junk columns (dropped by the wrapper).
        o_ref[0, :, W3:] = jnp.zeros((C_mid, W_out - W3), o_ref.dtype)


def _choose_b_tile(n, l_half):
    """Batch tile: 128-multiple lane-dense blocks, ~1024 lanes/phase, G >= 2."""
    base = LANE // math.gcd(l_half, LANE)
    b = base
    while b * l_half < 1024 and n > 2 * b:     # keep >= 2 grid steps (v7x: 2 TCs)
        b *= 2
    return b


@jax.jit
def cnn_block_forward(x, w1, b1, w2, b2):
    """x: (N, C_in, L); w1: (C_mid, C_in, K); w2: (C_mid, C_mid, K)."""
    N, C_in, L = x.shape
    C_mid, C_in_w, K = w1.shape
    assert C_in_w == C_in and w2.shape == (C_mid, C_mid, K)

    L1 = L - (K - 1)
    L2 = L1 - (K - 1)
    if L2 < POOL_K:
        raise ValueError(f"sequence length {L} too short for this block")
    L_pool = (L2 - POOL_K) // POOL_S + 1

    # Static guards: kept pooling windows never cross a folded batch segment,
    # and the phase-split layout assumptions hold for these hyperparameters.
    assert POOL_S == 2, "kernel phase-split layout assumes pool stride 2"
    assert POOL_S * (L_pool - 1) + (POOL_K - 1) + 2 * (K - 1) <= L - 1

    # Pad each sequence to even length so the even/odd phase split is exact
    # (the pad only ever feeds junk columns that get sliced away).
    Lp = L + (L % 2)
    if Lp != L:
        x = jnp.pad(x, ((0, 0), (0, 0), (0, Lp - L)))
    L_half = Lp // 2
    assert L_pool <= L_half - 2 * (K // 2) - (POOL_K - 1) // 2

    B_TILE = _choose_b_tile(N, L_half)
    G = pl.cdiv(N, B_TILE)
    Np = G * B_TILE
    if Np != N:
        x = jnp.concatenate([x, jnp.zeros((Np - N, C_in, Lp), x.dtype)], axis=0)
    BLp = B_TILE * Lp
    W_half = B_TILE * L_half                  # per-phase slab width == out width

    # Fold B_TILE batch elements into the lane axis.  For C_in == 1 this is a
    # pure reshape (no HBM transpose); the even/odd split is an XLA strided
    # slice, so no strided/gather work remains inside the kernel.
    if C_in == 1:
        xf = x.reshape(G, C_in, BLp)
    else:
        xf = (x.reshape(G, B_TILE, C_in, Lp)
               .transpose(0, 2, 1, 3)
               .reshape(G, C_in, BLp))
    xf = xf.astype(jnp.float32)
    x_even = xf[:, :, 0::2]                   # (G, C_in, W_half)
    x_odd = xf[:, :, 1::2]                    # (G, C_in, W_half)

    # One small packed params block with a constant index_map:
    # [ w2[:,:,k] on 128-lane-aligned spans | w1[:,:,k] | b1 | b2 ].
    w2_stride = ((C_mid + LANE - 1) // LANE) * LANE
    w1_off = K * w2_stride
    p_cols = w1_off + K * C_in + 2
    params = jnp.zeros((C_mid, p_cols), jnp.float32)
    for k in range(K):
        params = params.at[:, k * w2_stride:k * w2_stride + C_mid].set(
            w2[:, :, k].astype(jnp.float32))
        params = params.at[:, w1_off + k * C_in:w1_off + (k + 1) * C_in].set(
            w1[:, :, k].astype(jnp.float32))
    params = params.at[:, w1_off + K * C_in].set(b1.astype(jnp.float32))
    params = params.at[:, w1_off + K * C_in + 1].set(b2.astype(jnp.float32))

    kernel = functools.partial(_cnn_block_kernel, c_in=C_in, ksize=K,
                               w2_stride=w2_stride)
    out = pl.pallas_call(
        kernel,
        out_shape=jax.ShapeDtypeStruct((G, C_mid, W_half), jnp.float32),
        grid_spec=pltpu.PrefetchScalarGridSpec(
            num_scalar_prefetch=0,
            grid=(G,),
            in_specs=[
                pl.BlockSpec((1, C_in, W_half), lambda g: (g, 0, 0)),
                pl.BlockSpec((1, C_in, W_half), lambda g: (g, 0, 0)),
                # Constant block, < 20 KiB: default double-buffering is noise.
                # TODO(synk): pipeline_mode=pl.Buffered(1) if C_mid grows.
                pl.BlockSpec((C_mid, p_cols), lambda g: (0, 0)),
            ],
            out_specs=pl.BlockSpec((1, C_mid, W_half), lambda g: (g, 0, 0)),
        ),
        compiler_params=pltpu.CompilerParams(
            dimension_semantics=("parallel",),
            vmem_limit_bytes=32 * 1024 * 1024,
        ),
    )(x_even, x_odd, params)

    # Un-fold: (G, C_mid, B_TILE*L_half) -> (N, C_mid, L_pool).
    # NOTE (v5e): this transpose is the one remaining extra HBM pass; fuse the
    # un-fold into the consumer if this block feeds another on-chip op.
    out = out.reshape(G, C_mid, B_TILE, L_half)[..., :L_pool]
    out = out.transpose(0, 2, 1, 3).reshape(Np, C_mid, L_pool)
    return out[:N].astype(x.dtype)


def _reference_forward(x, w1, b1, w2, b2):
    """Pure-JAX reference matching PyTorch Conv1d/MaxPool1d semantics."""
    dn = ("NCH", "OIH", "NCH")
    c1 = lax.conv_general_dilated(x, w1, window_strides=(1,),
                                  padding="VALID", dimension_numbers=dn)
    c1r = jnp.maximum(c1 + b1[None, :, None], 0.0)
    c2 = lax.conv_general_dilated(c1r, w2, window_strides=(1,),
                                  padding="VALID", dimension_numbers=dn)
    c2r = jnp.maximum(c2 + b2[None, :, None], 0.0)
    return lax.reduce_window(c2r, -jnp.inf, lax.max,
                             window_dimensions=(1, 1, POOL_K),
                             window_strides=(1, 1, POOL_S),
                             padding="VALID")


if __name__ == "__main__":
    key = jax.random.PRNGKey(0)
    k_x, k_w1, k_b1, k_w2, k_b2 = jax.random.split(key, 5)

    N, L = 2, 32
    x = jax.random.normal(k_x, (N, IN_CH, L), jnp.float32)

    # Deterministic synthetic parameters (PyTorch Conv1d weight/bias shapes).
    fan1 = IN_CH * KSIZE
    fan2 = MID_CH * KSIZE
    w1 = jax.random.uniform(k_w1, (MID_CH, IN_CH, KSIZE), jnp.float32,
                            -1.0, 1.0) / jnp.sqrt(fan1)
    b1 = jax.random.uniform(k_b1, (MID_CH,), jnp.float32,
                            -1.0, 1.0) / jnp.sqrt(fan1)
    w2 = jax.random.uniform(k_w2, (MID_CH, MID_CH, KSIZE), jnp.float32,
                            -1.0, 1.0) / jnp.sqrt(fan2)
    b2 = jax.random.uniform(k_b2, (MID_CH,), jnp.float32,
                            -1.0, 1.0) / jnp.sqrt(fan2)

    out = cnn_block_forward(x, w1, b1, w2, b2)
    out = jax.block_until_ready(out)

    ref = _reference_forward(x, w1, b1, w2, b2)
    assert out.shape == ref.shape, (out.shape, ref.shape)
    assert jnp.allclose(out, ref, atol=1e-5, rtol=1e-5), "mismatch vs reference"

    print("KERNEL_OK")
</pallas_src>

<mosaic_0001>
module attributes {stable_mosaic.version = 11 : i64} {
  func.func @_cnn_block_kernel(%arg0: i32, %arg1: memref<1x1x128xf32, #tpu.memory_space<vmem>>, %arg2: memref<1x1x128xf32, #tpu.memory_space<vmem>>, %arg3: memref<12x389xf32, #tpu.memory_space<vmem>>, %arg4: memref<1x12x128xf32, #tpu.memory_space<vmem>>) attributes {dimension_semantics = [#tpu.dimension_semantics<parallel>], iteration_bounds = array<i64: 1>, scalar_prefetch = 0 : i64, scratch_operands = 0 : i64, tpu.core_type = #tpu.core_type<tc>, window_params = [{transform_indices = @transform_0, window_bounds = array<i64: 1, 1, 128>}, {transform_indices = @transform_1, window_bounds = array<i64: 1, 1, 128>}, {pipeline_mode = #tpu.pipeline_mode<synchronous>, transform_indices = @transform_2, window_bounds = array<i64: 12, 389>}, {transform_indices = @transform_3, window_bounds = array<i64: 1, 12, 128>}]} {
    %c0 = arith.constant 0 : index
    %c0_0 = arith.constant 0 : index
    %0 = vector.load %arg3[%c0, %c0_0] : memref<12x389xf32, #tpu.memory_space<vmem>>, vector<12x389xf32>
    %1 = vector.extract_strided_slice %0 {offsets = [0, 0], sizes = [12, 12], strides = [1, 1]} : vector<12x389xf32> to vector<12x12xf32>
    %2 = vector.extract_strided_slice %0 {offsets = [0, 128], sizes = [12, 12], strides = [1, 1]} : vector<12x389xf32> to vector<12x12xf32>
    %3 = vector.extract_strided_slice %0 {offsets = [0, 256], sizes = [12, 12], strides = [1, 1]} : vector<12x389xf32> to vector<12x12xf32>
    %4 = vector.extract_strided_slice %0 {offsets = [0, 384], sizes = [12, 1], strides = [1, 1]} : vector<12x389xf32> to vector<12x1xf32>
    %5 = vector.extract_strided_slice %0 {offsets = [0, 385], sizes = [12, 1], strides = [1, 1]} : vector<12x389xf32> to vector<12x1xf32>
    %6 = vector.extract_strided_slice %0 {offsets = [0, 386], sizes = [12, 1], strides = [1, 1]} : vector<12x389xf32> to vector<12x1xf32>
    %7 = vector.extract_strided_slice %0 {offsets = [0, 387], sizes = [12, 1], strides = [1, 1]} : vector<12x389xf32> to vector<12x1xf32>
    %8 = vector.extract_strided_slice %0 {offsets = [0, 388], sizes = [12, 1], strides = [1, 1]} : vector<12x389xf32> to vector<12x1xf32>
    %c0_1 = arith.constant 0 : index
    %c0_2 = arith.constant 0 : index
    %c0_3 = arith.constant 0 : index
    %9 = vector.load %arg1[%c0_1, %c0_2, %c0_3] : memref<1x1x128xf32, #tpu.memory_space<vmem>>, vector<1x1x128xf32>
    %10 = vector.shape_cast %9 : vector<1x1x128xf32> to vector<1x128xf32>
    %c0_4 = arith.constant 0 : index
    %c0_5 = arith.constant 0 : index
    %c0_6 = arith.constant 0 : index
    %11 = vector.load %arg2[%c0_4, %c0_5, %c0_6] : memref<1x1x128xf32, #tpu.memory_space<vmem>>, vector<1x1x128xf32>
    %12 = vector.shape_cast %11 : vector<1x1x128xf32> to vector<1x128xf32>
    %13 = vector.extract_strided_slice %10 {offsets = [0, 0], sizes = [1, 127], strides = [1, 1]} : vector<1x128xf32> to vector<1x127xf32>
    %14 = vector.broadcast %4 : vector<12x1xf32> to vector<12x127xf32>
    %15 = vector.broadcast %13 : vector<1x127xf32> to vector<12x127xf32>
    %16 = arith.mulf %14, %15 : vector<12x127xf32>
    %17 = vector.broadcast %7 : vector<12x1xf32> to vector<12x127xf32>
    %18 = arith.addf %17, %16 : vector<12x127xf32>
    %19 = vector.extract_strided_slice %12 {offsets = [0, 0], sizes = [1, 127], strides = [1, 1]} : vector<1x128xf32> to vector<1x127xf32>
    %20 = vector.broadcast %5 : vector<12x1xf32> to vector<12x127xf32>
    %21 = vector.broadcast %19 : vector<1x127xf32> to vector<12x127xf32>
    %22 = arith.mulf %20, %21 : vector<12x127xf32>
    %23 = arith.addf %18, %22 : vector<12x127xf32>
    %24 = vector.extract_strided_slice %10 {offsets = [0, 1], sizes = [1, 127], strides = [1, 1]} : vector<1x128xf32> to vector<1x127xf32>
    %25 = vector.broadcast %6 : vector<12x1xf32> to vector<12x127xf32>
    %26 = vector.broadcast %24 : vector<1x127xf32> to vector<12x127xf32>
    %27 = arith.mulf %25, %26 : vector<12x127xf32>
    %28 = arith.addf %23, %27 : vector<12x127xf32>
    %cst = arith.constant 0.000000e+00 : f32
    %29 = vector.broadcast %cst : f32 to vector<12x127xf32>
    %30 = arith.maximumf %28, %29 : vector<12x127xf32>
    %31 = vector.extract_strided_slice %12 {offsets = [0, 0], sizes = [1, 127], strides = [1, 1]} : vector<1x128xf32> to vector<1x127xf32>
    %32 = vector.broadcast %4 : vector<12x1xf32> to vector<12x127xf32>
    %33 = vector.broadcast %31 : vector<1x127xf32> to vector<12x127xf32>
    %34 = arith.mulf %32, %33 : vector<12x127xf32>
    %35 = vector.broadcast %7 : vector<12x1xf32> to vector<12x127xf32>
    %36 = arith.addf %35, %34 : vector<12x127xf32>
    %37 = vector.extract_strided_slice %10 {offsets = [0, 1], sizes = [1, 127], strides = [1, 1]} : vector<1x128xf32> to vector<1x127xf32>
    %38 = vector.broadcast %5 : vector<12x1xf32> to vector<12x127xf32>
    %39 = vector.broadcast %37 : vector<1x127xf32> to vector<12x127xf32>
    %40 = arith.mulf %38, %39 : vector<12x127xf32>
    %41 = arith.addf %36, %40 : vector<12x127xf32>
    %42 = vector.extract_strided_slice %12 {offsets = [0, 1], sizes = [1, 127], strides = [1, 1]} : vector<1x128xf32> to vector<1x127xf32>
    %43 = vector.broadcast %6 : vector<12x1xf32> to vector<12x127xf32>
    %44 = vector.broadcast %42 : vector<1x127xf32> to vector<12x127xf32>
    %45 = arith.mulf %43, %44 : vector<12x127xf32>
    %46 = arith.addf %41, %45 : vector<12x127xf32>
    %cst_7 = arith.constant 0.000000e+00 : f32
    %47 = vector.broadcast %cst_7 : f32 to vector<12x127xf32>
    %48 = arith.maximumf %46, %47 : vector<12x127xf32>
    %49 = vector.extract_strided_slice %30 {offsets = [0, 0], sizes = [12, 126], strides = [1, 1]} : vector<12x127xf32> to vector<12x126xf32>
    %cst_8 = arith.constant dense<0.000000e+00> : vector<12x126xf32>
    %50 = tpu.matmul %1, %49, %cst_8 {dimension_numbers = #tpu.dot_dimension_numbers<[1], [0], [0], [1], [0, 0, 1, 1], [], []>} : vector<12x12xf32>, vector<12x126xf32>, vector<12x126xf32> -> vector<12x126xf32>
    %51 = vector.broadcast %8 : vector<12x1xf32> to vector<12x126xf32>
    %52 = arith.addf %51, %50 : vector<12x126xf32>
    %53 = vector.extract_strided_slice %48 {offsets = [0, 0], sizes = [12, 126], strides = [1, 1]} : vector<12x127xf32> to vector<12x126xf32>
    %cst_9 = arith.constant dense<0.000000e+00> : vector<12x126xf32>
    %54 = tpu.matmul %2, %53, %cst_9 {dimension_numbers = #tpu.dot_dimension_numbers<[1], [0], [0], [1], [0, 0, 1, 1], [], []>} : vector<12x12xf32>, vector<12x126xf32>, vector<12x126xf32> -> vector<12x126xf32>
    %55 = arith.addf %52, %54 : vector<12x126xf32>
    %56 = vector.extract_strided_slice %30 {offsets = [0, 1], sizes = [12, 126], strides = [1, 1]} : vector<12x127xf32> to vector<12x126xf32>
    %cst_10 = arith.constant dense<0.000000e+00> : vector<12x126xf32>
    %57 = tpu.matmul %3, %56, %cst_10 {dimension_numbers = #tpu.dot_dimension_numbers<[1], [0], [0], [1], [0, 0, 1, 1], [], []>} : vector<12x12xf32>, vector<12x126xf32>, vector<12x126xf32> -> vector<12x126xf32>
    %58 = arith.addf %55, %57 : vector<12x126xf32>
    %cst_11 = arith.constant 0.000000e+00 : f32
    %59 = vector.broadcast %cst_11 : f32 to vector<12x126xf32>
    %60 = arith.maximumf %58, %59 : vector<12x126xf32>
    %61 = vector.extract_strided_slice %48 {offsets = [0, 0], sizes = [12, 126], strides = [1, 1]} : vector<12x127xf32> to vector<12x126xf32>
    %cst_12 = arith.constant dense<0.000000e+00> : vector<12x126xf32>
    %62 = tpu.matmul %1, %61, %cst_12 {dimension_numbers = #tpu.dot_dimension_numbers<[1], [0], [0], [1], [0, 0, 1, 1], [], []>} : vector<12x12xf32>, vector<12x126xf32>, vector<12x126xf32> -> vector<12x126xf32>
    %63 = vector.broadcast %8 : vector<12x1xf32> to vector<12x126xf32>
    %64 = arith.addf %63, %62 : vector<12x126xf32>
    %65 = vector.extract_strided_slice %30 {offsets = [0, 1], sizes = [12, 126], strides = [1, 1]} : vector<12x127xf32> to vector<12x126xf32>
    %cst_13 = arith.constant dense<0.000000e+00> : vector<12x126xf32>
    %66 = tpu.matmul %2, %65, %cst_13 {dimension_numbers = #tpu.dot_dimension_numbers<[1], [0], [0], [1], [0, 0, 1, 1], [], []>} : vector<12x12xf32>, vector<12x126xf32>, vector<12x126xf32> -> vector<12x126xf32>
    %67 = arith.addf %64, %66 : vector<12x126xf32>
    %68 = vector.extract_strided_slice %48 {offsets = [0, 1], sizes = [12, 126], strides = [1, 1]} : vector<12x127xf32> to vector<12x126xf32>
    %cst_14 = arith.constant dense<0.000000e+00> : vector<12x126xf32>
    %69 = tpu.matmul %3, %68, %cst_14 {dimension_numbers = #tpu.dot_dimension_numbers<[1], [0], [0], [1], [0, 0, 1, 1], [], []>} : vector<12x12xf32>, vector<12x126xf32>, vector<12x126xf32> -> vector<12x126xf32>
    %70 = arith.addf %67, %69 : vector<12x126xf32>
    %cst_15 = arith.constant 0.000000e+00 : f32
    %71 = vector.broadcast %cst_15 : f32 to vector<12x126xf32>
    %72 = arith.maximumf %70, %71 : vector<12x126xf32>
    %73 = vector.extract_strided_slice %60 {offsets = [0, 0], sizes = [12, 125], strides = [1, 1]} : vector<12x126xf32> to vector<12x125xf32>
    %74 = vector.extract_strided_slice %72 {offsets = [0, 0], sizes = [12, 125], strides = [1, 1]} : vector<12x126xf32> to vector<12x125xf32>
    %75 = vector.extract_strided_slice %60 {offsets = [0, 1], sizes = [12, 125], strides = [1, 1]} : vector<12x126xf32> to vector<12x125xf32>
    %76 = vector.extract_strided_slice %72 {offsets = [0, 1], sizes = [12, 125], strides = [1, 1]} : vector<12x126xf32> to vector<12x125xf32>
    %77 = arith.maximumf %73, %74 : vector<12x125xf32>
    %78 = arith.maximumf %75, %76 : vector<12x125xf32>
    %79 = arith.maximumf %77, %78 : vector<12x125xf32>
    %c0_16 = arith.constant 0 : index
    %c0_17 = arith.constant 0 : index
    %c0_18 = arith.constant 0 : index
    %80 = vector.load %arg4[%c0_16, %c0_17, %c0_18] : memref<1x12x128xf32, #tpu.memory_space<vmem>>, vector<1x12x125xf32>
    %81 = vector.shape_cast %80 : vector<1x12x125xf32> to vector<12x125xf32>
    %82 = vector.shape_cast %79 : vector<12x125xf32> to vector<1x12x125xf32>
    tpu.vector_store %arg4[%c0_16, %c0_17, %c0_18], %82 {strides = array<i32>} : memref<1x12x128xf32, #tpu.memory_space<vmem>>, vector<1x12x125xf32>,
    %cst_19 = arith.constant 0.000000e+00 : f32
    %83 = vector.broadcast %cst_19 : f32 to vector<12x3xf32>
    %c0_20 = arith.constant 0 : index
    %c0_21 = arith.constant 0 : index
    %c125 = arith.constant 125 : index
    %84 = vector.load %arg4[%c0_20, %c0_21, %c125] : memref<1x12x128xf32, #tpu.memory_space<vmem>>, vector<1x12x3xf32>
    %85 = vector.shape_cast %84 : vector<1x12x3xf32> to vector<12x3xf32>
    %86 = vector.shape_cast %83 : vector<12x3xf32> to vector<1x12x3xf32>
    tpu.vector_store %arg4[%c0_20, %c0_21, %c125], %86 {strides = array<i32>} : memref<1x12x128xf32, #tpu.memory_space<vmem>>, vector<1x12x3xf32>,
    return
  }
  func.func @transform_0(%arg0: i32) -> (i32, i32, i32) {
    %c0_i32 = arith.constant 0 : i32
    %c0_i32_0 = arith.constant 0 : i32
    %c0_i32_1 = arith.constant 0 : i32
    return %arg0, %c0_i32, %c0_i32_0 : i32, i32, i32
  }
  func.func @transform_1(%arg0: i32) -> (i32, i32, i32) {
    %c0_i32 = arith.constant 0 : i32
    %c0_i32_0 = arith.constant 0 : i32
    %c0_i32_1 = arith.constant 0 : i32
    return %arg0, %c0_i32, %c0_i32_0 : i32, i32, i32
  }
  func.func @transform_2(%arg0: i32) -> (i32, i32) {
    %c0_i32 = arith.constant 0 : i32
    %c0_i32_0 = arith.constant 0 : i32
    %c0_i32_1 = arith.constant 0 : i32
    return %c0_i32, %c0_i32_0 : i32, i32
  }
  func.func @transform_3(%arg0: i32) -> (i32, i32, i32) {
    %c0_i32 = arith.constant 0 : i32
    %c0_i32_0 = arith.constant 0 : i32
    %c0_i32_1 = arith.constant 0 : i32
    return %arg0, %c0_i32, %c0_i32_0 : i32, i32, i32
  }
}

</mosaic_0001>

<llo_original>
// kernel: cnn_block_forward.1
$region0: #{cnn_block_forward.1}
  #allocation0 [shape = 'u32[]', space=smem, size = 0x4, offset = 0x4, fixed_abs, tag = 'smem constant byte address 0x4 - core index']
  #allocation1 [shape = 'u32[144,128]{1,0:T(1,128)}', space=vmem, size = 0x12000, scoped, tag = 'internal scratch']
  %s0 = inlined_call_operand.vmem [shape: f32[1,1,128], index: 0, kind: input, shape index: {}]
  %s1 = inlined_call_operand.vmem [shape: f32[1,1,128], index: 1, kind: input, shape index: {}]
  %s2 = inlined_call_operand.vmem [shape: f32[12,389], index: 2, kind: input, shape index: {}]
  %s3 = inlined_call_operand.vmem [shape: f32[1,12,128], index: 3, kind: output, shape index: {}]
  %s4 = sld [smem:[#allocation0]]
  $region22: #{cnn_block_forward.1} parent=0
    _
  %s6 = ssub.s32 1, %s4
  %s7 = scalar_select 0, %s6, %s4
  // Predicated region
  $region2: #{cnn_block_forward.1} parent=0 // pred_check
    _
  $region3: #{cnn_block_forward.1} parent=0 // pred_check_branch
    %9 = sbr.rel (0) target = $region5
  $region4: #{cnn_block_forward.1} parent=0 // pred_region
    _
  $region5: #{cnn_block_forward.1} parent=0 // pred_fallthru
    _
  // Predicated region
  $region6: #{cnn_block_forward.1} parent=0 // pred_check
    _
  $region7: #{cnn_block_forward.1} parent=0 // pred_check_branch
    %11 = sbr.rel (0) target = $region9
  $region8: #{cnn_block_forward.1} parent=0 // pred_region
    _
  $region9: #{cnn_block_forward.1} parent=0 // pred_fallthru
    _
  // Predicated region
  $region10: #{cnn_block_forward.1} parent=0 // pred_check
    _
  $region11: #{cnn_block_forward.1} parent=0 // pred_check_branch
    %13 = sbr.rel (0) target = $region13
  $region12: #{cnn_block_forward.1} parent=0 // pred_region
    _
  $region13: #{cnn_block_forward.1} parent=0 // pred_fallthru
    _
  %v14 = vld [vmem:[%s2] sm:$0xff]
  %v15 = vld [vmem:[%s2 + $0x8] sm:$0xff]
  %v16 = vld [vmem:[%s2 + $0x10] sm:$0xff]
  %v17 = vld [vmem:[%s2 + $0x18] sm:$0xff]
  %v18 = vld [vmem:[%s2 + $0x20] sm:$0xf]
  %v19 = vld [vmem:[%s2 + $0x28] sm:$0xf]
  %v20 = vld [vmem:[%s2 + $0x30] sm:$0xf]
  %v21 = vld [vmem:[%s2 + $0x38] sm:$0xf]
  %v22 = vld [vmem:[%s0] sm:$0x1]
  %v23 = vld [vmem:[%s1] sm:$0x1]
  %25 = vset.pattern.permute.xlu0 0
  %26 = vperm.xlu0 %25, %v17
  %v27 = vpop.permute.xlu0 %26
  %30 = vset.pattern.permute.xlu0 0
  %31 = vperm.xlu0 %30, %v21
  %v32 = vpop.permute.xlu0 %31
  %v35 = vlaneseq
  %v36 = vshrl.u32 %v35, 7
  %v37 = vsub.s32 0, %v36
  %v38 = vrot.slane %v22, %v37
  %v40 = vmul.f32 %v27, %v38
  %v41 = vmul.f32 %v32, %v38
  %42 = vset.pattern.permute.xlu0 3
  %43 = vperm.xlu0 %42, %v17
  %v44 = vpop.permute.xlu0 %43
  %46 = vset.pattern.permute.xlu0 3
  %47 = vperm.xlu0 %46, %v21
  %v48 = vpop.permute.xlu0 %47
  %v50 = vadd.f32 %v44, %v40
  %v51 = vadd.f32 %v48, %v41
  %52 = vset.pattern.permute.xlu0 1
  %53 = vperm.xlu0 %52, %v17
  %v54 = vpop.permute.xlu0 %53
  %56 = vset.pattern.permute.xlu0 1
  %57 = vperm.xlu0 %56, %v21
  %v58 = vpop.permute.xlu0 %57
  %v61 = vlaneseq
  %v62 = vshrl.u32 %v61, 7
  %v63 = vsub.s32 0, %v62
  %v64 = vrot.slane %v23, %v63
  %v66 = vmul.f32 %v54, %v64
  %v67 = vmul.f32 %v58, %v64
  %v68 = vadd.f32 %v50, %v66
  %v69 = vadd.f32 %v51, %v67
  %70 = vset.pattern.permute.xlu0 2
  %71 = vperm.xlu0 %70, %v17
  %v72 = vpop.permute.xlu0 %71
  %74 = vset.pattern.permute.xlu0 2
  %75 = vperm.xlu0 %74, %v21
  %v76 = vpop.permute.xlu0 %75
  %v78 = vmul.f32 %v72, %v38
  %v79 = vmul.f32 %v76, %v38
  %82 = vrot.lane.b32.xlu0 %v78, 127
  %v83 = vpop.permute.xlu0 %82
  %84 = vrot.lane.b32.xlu0 %v79, 127
  %v85 = vpop.permute.xlu0 %84
  %v88 = vadd.f32 %v68, %v83
  %v89 = vadd.f32 %v69, %v85
  %v90 = vmax.f32 %v88, 0.0
  %v91 = vmax.f32 %v89, 0.0
  %v92 = vmul.f32 %v27, %v64
  %v93 = vmul.f32 %v32, %v64
  %v94 = vadd.f32 %v44, %v92
  %v95 = vadd.f32 %v48, %v93
  %v96 = vmul.f32 %v54, %v38
  %v97 = vmul.f32 %v58, %v38
  %100 = vrot.lane.b32.xlu0 %v96, 127
  %v101 = vpop.permute.xlu0 %100
  %102 = vrot.lane.b32.xlu0 %v97, 127
  %v103 = vpop.permute.xlu0 %102
  %v106 = vadd.f32 %v94, %v101
  %v107 = vadd.f32 %v95, %v103
  %v108 = vmul.f32 %v72, %v64
  %v109 = vmul.f32 %v76, %v64
  %112 = vrot.lane.b32.xlu0 %v108, 127
  %v113 = vpop.permute.xlu0 %112
  %114 = vrot.lane.b32.xlu0 %v109, 127
  %v115 = vpop.permute.xlu0 %114
  %v118 = vadd.f32 %v106, %v113
  %v119 = vadd.f32 %v107, %v115
  %v120 = vmax.f32 %v118, 0.0
  %v121 = vmax.f32 %v119, 0.0
  %vm122 = vcmask 97280
  %v124 = vsel %vm122, %v14, 0
  %v127 = vsel %vm122, %v18, 0
  %vm129 = vcmask 1043456
  %v131 = vsel %vm129, %v91, 0
  %133 = vmatprep.subr.mxu0 0.0
  %134 = vmatpush1.msra.mxu0 0.0
  %135 = vmatprep.subr.mxu0 0.0
  %136 = vmatpush1.msra.mxu0 0.0
  %137 = vmatprep.subr.mxu0 0.0
  %138 = vmatpush1.msra.mxu0 0.0
  %139 = vmatprep.subr.mxu0 0.0
  %140 = vmatpush1.msra.mxu0 0.0
  %141 = vmatprep.subr.mxu0 0.0
  %142 = vmatpush1.msra.mxu0 0.0
  %143 = vmatprep.subr.mxu0 0.0
  %144 = vmatpush1.msra.mxu0 0.0
  %145 = vmatprep.subr.mxu0 0.0
  %146 = vmatpush1.msra.mxu0 0.0
  %147 = vmatprep.subr.mxu0 0.0
  %148 = vmatpush1.msra.mxu0 0.0
  %149 = vmatprep.subr.mxu0 0.0
  %150 = vmatpush1.msra.mxu0 0.0
  %151 = vmatprep.subr.mxu0 0.0
  %152 = vmatpush1.msra.mxu0 0.0
  %153 = vmatprep.subr.mxu0 0.0
  %154 = vmatpush1.msra.mxu0 0.0
  %155 = vmatprep.subr.mxu0 0.0
  %156 = vmatpush1.msra.mxu0 0.0
  %157 = vmatprep.subr.mxu0 0.0
  %158 = vmatpush1.msra.mxu0 0.0
  %159 = vmatprep.subr.mxu0 0.0
  %160 = vmatpush1.msra.mxu0 0.0
  %161 = vmatprep.subr.mxu0 0.0
  %162 = vmatpush1.msra.mxu0 %v131
  %163 = vmatprep.subr.mxu0 0.0
  %164 = vmatpush1.msra.mxu0 %v90
  %165 = vmatprep.subr.mxu0 0.0
  %166 = vmatpush2.msra.mxu0 0.0
  %167 = vmatprep.subr.mxu0 0.0
  %168 = vmatpush2.msra.mxu0 0.0
  %169 = vmatprep.subr.mxu0 0.0
  %170 = vmatpush2.msra.mxu0 0.0
  %171 = vmatprep.subr.mxu0 0.0
  %172 = vmatpush2.msra.mxu0 0.0
  %173 = vmatprep.subr.mxu0 0.0
  %174 = vmatpush2.msra.mxu0 0.0
  %175 = vmatprep.subr.mxu0 0.0
  %176 = vmatpush2.msra.mxu0 0.0
  %177 = vmatprep.subr.mxu0 0.0
  %178 = vmatpush2.msra.mxu0 0.0
  %179 = vmatprep.subr.mxu0 0.0
  %180 = vmatpush2.msra.mxu0 0.0
  %181 = vmatprep.subr.mxu0 0.0
  %182 = vmatpush2.msra.mxu0 0.0
  %183 = vmatprep.subr.mxu0 0.0
  %184 = vmatpush2.msra.mxu0 0.0
  %185 = vmatprep.subr.mxu0 0.0
  %186 = vmatpush2.msra.mxu0 0.0
  %187 = vmatprep.subr.mxu0 0.0
  %188 = vmatpush2.msra.mxu0 0.0
  %189 = vmatprep.subr.mxu0 0.0
  %190 = vmatpush2.msra.mxu0 0.0
  %191 = vmatprep.subr.mxu0 0.0
  %192 = vmatpush2.msra.mxu0 0.0
  %193 = vmatprep.subr.mxu0 0.0
  %194 = vmatpush2.msra.mxu0 0.0
  %195 = vmatprep.subr.mxu0 0.0
  %196 = vmatpush2.msra.mxu0 0.0
  %197 = vmatprep.mubr.f32.mxu0 0.0
  %198 = vmatmul.mubr.f32.gmra.mxu0 %v124
  %v199 = vpop.f32.mrf.mxu0
  %v200 = vadd.f32 0.0, %v199
  %v201 = vpop.f32.mrf.mxu0
  %202 = vmatprep.mubr.f32.mxu0 0.0
  %203 = vmatmul.mubr.f32.gmra.mxu0 %v127
  %v204 = vpop.f32.mrf.mxu0
  %v205 = vadd.f32 0.0, %v204
  %v206 = vpop.f32.mrf.mxu0
  %207 = vdwg.mxu0
  %208 = vset.pattern.permute.xlu0 4
  %209 = vperm.xlu0 %208, %v17
  %v210 = vpop.permute.xlu0 %209
  %212 = vset.pattern.permute.xlu0 4
  %213 = vperm.xlu0 %212, %v21
  %v214 = vpop.permute.xlu0 %213
  %v216 = vadd.f32 %v210, %v200
  %v217 = vadd.f32 %v214, %v205
  %v219 = vsel %vm122, %v15, 0
  %v222 = vsel %vm122, %v19, 0
  %v225 = vsel %vm129, %v121, 0
  %227 = vmatprep.subr.mxu0 0.0
  %228 = vmatpush1.msra.mxu0 0.0
  %229 = vmatprep.subr.mxu0 0.0
  %230 = vmatpush1.msra.mxu0 0.0
  %231 = vmatprep.subr.mxu0 0.0
  %232 = vmatpush1.msra.mxu0 0.0
  %233 = vmatprep.subr.mxu0 0.0
  %234 = vmatpush1.msra.mxu0 0.0
  %235 = vmatprep.subr.mxu0 0.0
  %236 = vmatpush1.msra.mxu0 0.0
  %237 = vmatprep.subr.mxu0 0.0
  %238 = vmatpush1.msra.mxu0 0.0
  %239 = vmatprep.subr.mxu0 0.0
  %240 = vmatpush1.msra.mxu0 0.0
  %241 = vmatprep.subr.mxu0 0.0
  %242 = vmatpush1.msra.mxu0 0.0
  %243 = vmatprep.subr.mxu0 0.0
  %244 = vmatpush1.msra.mxu0 0.0
  %245 = vmatprep.subr.mxu0 0.0
  %246 = vmatpush1.msra.mxu0 0.0
  %247 = vmatprep.subr.mxu0 0.0
  %248 = vmatpush1.msra.mxu0 0.0
  %249 = vmatprep.subr.mxu0 0.0
  %250 = vmatpush1.msra.mxu0 0.0
  %251 = vmatprep.subr.mxu0 0.0
  %252 = vmatpush1.msra.mxu0 0.0
  %253 = vmatprep.subr.mxu0 0.0
  %254 = vmatpush1.msra.mxu0 0.0
  %255 = vmatprep.subr.mxu0 0.0
  %256 = vmatpush1.msra.mxu0 %v225
  %257 = vmatprep.subr.mxu0 0.0
  %258 = vmatpush1.msra.mxu0 %v120
  %259 = vmatprep.subr.mxu0 0.0
  %260 = vmatpush2.msra.mxu0 0.0
  %261 = vmatprep.subr.mxu0 0.0
  %262 = vmatpush2.msra.mxu0 0.0
  %263 = vmatprep.subr.mxu0 0.0
  %264 = vmatpush2.msra.mxu0 0.0
  %265 = vmatprep.subr.mxu0 0.0
  %266 = vmatpush2.msra.mxu0 0.0
  %267 = vmatprep.subr.mxu0 0.0
  %268 = vmatpush2.msra.mxu0 0.0
  %269 = vmatprep.subr.mxu0 0.0
  %270 = vmatpush2.msra.mxu0 0.0
  %271 = vmatprep.subr.mxu0 0.0
  %272 = vmatpush2.msra.mxu0 0.0
  %273 = vmatprep.subr.mxu0 0.0
  %274 = vmatpush2.msra.mxu0 0.0
  %275 = vmatprep.subr.mxu0 0.0
  %276 = vmatpush2.msra.mxu0 0.0
  %277 = vmatprep.subr.mxu0 0.0
  %278 = vmatpush2.msra.mxu0 0.0
  %279 = vmatprep.subr.mxu0 0.0
  %280 = vmatpush2.msra.mxu0 0.0
  %281 = vmatprep.subr.mxu0 0.0
  %282 = vmatpush2.msra.mxu0 0.0
  %283 = vmatprep.subr.mxu0 0.0
  %284 = vmatpush2.msra.mxu0 0.0
  %285 = vmatprep.subr.mxu0 0.0
  %286 = vmatpush2.msra.mxu0 0.0
  %287 = vmatprep.subr.mxu0 0.0
  %288 = vmatpush2.msra.mxu0 0.0
  %289 = vmatprep.subr.mxu0 0.0
  %290 = vmatpush2.msra.mxu0 0.0
  %291 = vmatprep.mubr.f32.mxu0 0.0
  %292 = vmatmul.mubr.f32.gmra.mxu0 %v219
  %v293 = vpop.f32.mrf.mxu0
  %v294 = vadd.f32 0.0, %v293
  %v295 = vpop.f32.mrf.mxu0
  %296 = vmatprep.mubr.f32.mxu0 0.0
  %297 = vmatmul.mubr.f32.gmra.mxu0 %v222
  %v298 = vpop.f32.mrf.mxu0
  %v299 = vadd.f32 0.0, %v298
  %v300 = vpop.f32.mrf.mxu0
  %301 = vdwg.mxu0
  %v302 = vadd.f32 %v216, %v294
  %v303 = vadd.f32 %v217, %v299
  %305 = vrot.lane.b32.xlu0 %v90, 127
  %v306 = vpop.permute.xlu0 %305
  %307 = vrot.lane.b32.xlu0 %v91, 127
  %v308 = vpop.permute.xlu0 %307
  %v311 = vsel %vm122, %v16, 0
  %v314 = vsel %vm122, %v20, 0
  %v316 = vsel %vm129, %v308, 0
  %318 = vmatprep.subr.mxu0 0.0
  %319 = vmatpush1.msra.mxu0 0.0
  %320 = vmatprep.subr.mxu0 0.0
  %321 = vmatpush1.msra.mxu0 0.0
  %322 = vmatprep.subr.mxu0 0.0
  %323 = vmatpush1.msra.mxu0 0.0
  %324 = vmatprep.subr.mxu0 0.0
  %325 = vmatpush1.msra.mxu0 0.0
  %326 = vmatprep.subr.mxu0 0.0
  %327 = vmatpush1.msra.mxu0 0.0
  %328 = vmatprep.subr.mxu0 0.0
  %329 = vmatpush1.msra.mxu0 0.0
  %330 = vmatprep.subr.mxu0 0.0
  %331 = vmatpush1.msra.mxu0 0.0
  %332 = vmatprep.subr.mxu0 0.0
  %333 = vmatpush1.msra.mxu0 0.0
  %334 = vmatprep.subr.mxu0 0.0
  %335 = vmatpush1.msra.mxu0 0.0
  %336 = vmatprep.subr.mxu0 0.0
  %337 = vmatpush1.msra.mxu0 0.0
  %338 = vmatprep.subr.mxu0 0.0
  %339 = vmatpush1.msra.mxu0 0.0
  %340 = vmatprep.subr.mxu0 0.0
  %341 = vmatpush1.msra.mxu0 0.0
  %342 = vmatprep.subr.mxu0 0.0
  %343 = vmatpush1.msra.mxu0 0.0
  %344 = vmatprep.subr.mxu0 0.0
  %345 = vmatpush1.msra.mxu0 0.0
  %346 = vmatprep.subr.mxu0 0.0
  %347 = vmatpush1.msra.mxu0 %v316
  %348 = vmatprep.subr.mxu0 0.0
  %349 = vmatpush1.msra.mxu0 %v306
  %350 = vmatprep.subr.mxu0 0.0
  %351 = vmatpush2.msra.mxu0 0.0
  %352 = vmatprep.subr.mxu0 0.0
  %353 = vmatpush2.msra.mxu0 0.0
  %354 = vmatprep.subr.mxu0 0.0
  %355 = vmatpush2.msra.mxu0 0.0
  %356 = vmatprep.subr.mxu0 0.0
  %357 = vmatpush2.msra.mxu0 0.0
  %358 = vmatprep.subr.mxu0 0.0
  %359 = vmatpush2.msra.mxu0 0.0
  %360 = vmatprep.subr.mxu0 0.0
  %361 = vmatpush2.msra.mxu0 0.0
  %362 = vmatprep.subr.mxu0 0.0
  %363 = vmatpush2.msra.mxu0 0.0
  %364 = vmatprep.subr.mxu0 0.0
  %365 = vmatpush2.msra.mxu0 0.0
  %366 = vmatprep.subr.mxu0 0.0
  %367 = vmatpush2.msra.mxu0 0.0
  %368 = vmatprep.subr.mxu0 0.0
  %369 = vmatpush2.msra.mxu0 0.0
  %370 = vmatprep.subr.mxu0 0.0
  %371 = vmatpush2.msra.mxu0 0.0
  %372 = vmatprep.subr.mxu0 0.0
  %373 = vmatpush2.msra.mxu0 0.0
  %374 = vmatprep.subr.mxu0 0.0
  %375 = vmatpush2.msra.mxu0 0.0
  %376 = vmatprep.subr.mxu0 0.0
  %377 = vmatpush2.msra.mxu0 0.0
  %378 = vmatprep.subr.mxu0 0.0
  %379 = vmatpush2.msra.mxu0 0.0
  %380 = vmatprep.subr.mxu0 0.0
  %381 = vmatpush2.msra.mxu0 0.0
  %382 = vmatprep.mubr.f32.mxu0 0.0
  %383 = vmatmul.mubr.f32.gmra.mxu0 %v311
  %v384 = vpop.f32.mrf.mxu0
  %v385 = vadd.f32 0.0, %v384
  %v386 = vpop.f32.mrf.mxu0
  %387 = vmatprep.mubr.f32.mxu0 0.0
  %388 = vmatmul.mubr.f32.gmra.mxu0 %v314
  %v389 = vpop.f32.mrf.mxu0
  %v390 = vadd.f32 0.0, %v389
  %v391 = vpop.f32.mrf.mxu0
  %392 = vdwg.mxu0
  %v393 = vadd.f32 %v302, %v385
  %v394 = vadd.f32 %v303, %v390
  %v395 = vmax.f32 %v393, 0.0
  %v396 = vmax.f32 %v394, 0.0
  %397 = vmatprep.subr.mxu0 0.0
  %398 = vmatpush1.msra.mxu0 0.0
  %399 = vmatprep.subr.mxu0 0.0
  %400 = vmatpush1.msra.mxu0 0.0
  %401 = vmatprep.subr.mxu0 0.0
  %402 = vmatpush1.msra.mxu0 0.0
  %403 = vmatprep.subr.mxu0 0.0
  %404 = vmatpush1.msra.mxu0 0.0
  %405 = vmatprep.subr.mxu0 0.0
  %406 = vmatpush1.msra.mxu0 0.0
  %407 = vmatprep.subr.mxu0 0.0
  %408 = vmatpush1.msra.mxu0 0.0
  %409 = vmatprep.subr.mxu0 0.0
  %410 = vmatpush1.msra.mxu0 0.0
  %411 = vmatprep.subr.mxu0 0.0
  %412 = vmatpush1.msra.mxu0 0.0
  %413 = vmatprep.subr.mxu0 0.0
  %414 = vmatpush1.msra.mxu0 0.0
  %415 = vmatprep.subr.mxu0 0.0
  %416 = vmatpush1.msra.mxu0 0.0
  %417 = vmatprep.subr.mxu0 0.0
  %418 = vmatpush1.msra.mxu0 0.0
  %419 = vmatprep.subr.mxu0 0.0
  %420 = vmatpush1.msra.mxu0 0.0
  %421 = vmatprep.subr.mxu0 0.0
  %422 = vmatpush1.msra.mxu0 0.0
  %423 = vmatprep.subr.mxu0 0.0
  %424 = vmatpush1.msra.mxu0 0.0
  %425 = vmatprep.subr.mxu0 0.0
  %426 = vmatpush1.msra.mxu0 %v225
  %427 = vmatprep.subr.mxu0 0.0
  %428 = vmatpush1.msra.mxu0 %v120
  %429 = vmatprep.subr.mxu0 0.0
  %430 = vmatpush2.msra.mxu0 0.0
  %431 = vmatprep.subr.mxu0 0.0
  %432 = vmatpush2.msra.mxu0 0.0
  %433 = vmatprep.subr.mxu0 0.0
  %434 = vmatpush2.msra.mxu0 0.0
  %435 = vmatprep.subr.mxu0 0.0
  %436 = vmatpush2.msra.mxu0 0.0
  %437 = vmatprep.subr.mxu0 0.0
  %438 = vmatpush2.msra.mxu0 0.0
  %439 = vmatprep.subr.mxu0 0.0
  %440 = vmatpush2.msra.mxu0 0.0
  %441 = vmatprep.subr.mxu0 0.0
  %442 = vmatpush2.msra.mxu0 0.0
  %443 = vmatprep.subr.mxu0 0.0
  %444 = vmatpush2.msra.mxu0 0.0
  %445 = vmatprep.subr.mxu0 0.0
  %446 = vmatpush2.msra.mxu0 0.0
  %447 = vmatprep.subr.mxu0 0.0
  %448 = vmatpush2.msra.mxu0 0.0
  %449 = vmatprep.subr.mxu0 0.0
  %450 = vmatpush2.msra.mxu0 0.0
  %451 = vmatprep.subr.mxu0 0.0
  %452 = vmatpush2.msra.mxu0 0.0
  %453 = vmatprep.subr.mxu0 0.0
  %454 = vmatpush2.msra.mxu0 0.0
  %455 = vmatprep.subr.mxu0 0.0
  %456 = vmatpush2.msra.mxu0 0.0
  %457 = vmatprep.subr.mxu0 0.0
  %458 = vmatpush2.msra.mxu0 0.0
  %459 = vmatprep.subr.mxu0 0.0
  %460 = vmatpush2.msra.mxu0 0.0
  %461 = vmatprep.mubr.f32.mxu0 0.0
  %462 = vmatmul.mubr.f32.gmra.mxu0 %v124
  %v463 = vpop.f32.mrf.mxu0
  %v464 = vadd.f32 0.0, %v463
  %v465 = vpop.f32.mrf.mxu0
  %466 = vmatprep.mubr.f32.mxu0 0.0
  %467 = vmatmul.mubr.f32.gmra.mxu0 %v127
  %v468 = vpop.f32.mrf.mxu0
  %v469 = vadd.f32 0.0, %v468
  %v470 = vpop.f32.mrf.mxu0
  %471 = vdwg.mxu0
  %v472 = vadd.f32 %v210, %v464
  %v473 = vadd.f32 %v214, %v469
  %474 = vmatprep.subr.mxu0 0.0
  %475 = vmatpush1.msra.mxu0 0.0
  %476 = vmatprep.subr.mxu0 0.0
  %477 = vmatpush1.msra.mxu0 0.0
  %478 = vmatprep.subr.mxu0 0.0
  %479 = vmatpush1.msra.mxu0 0.0
  %480 = vmatprep.subr.mxu0 0.0
  %481 = vmatpush1.msra.mxu0 0.0
  %482 = vmatprep.subr.mxu0 0.0
  %483 = vmatpush1.msra.mxu0 0.0
  %484 = vmatprep.subr.mxu0 0.0
  %485 = vmatpush1.msra.mxu0 0.0
  %486 = vmatprep.subr.mxu0 0.0
  %487 = vmatpush1.msra.mxu0 0.0
  %488 = vmatprep.subr.mxu0 0.0
  %489 = vmatpush1.msra.mxu0 0.0
  %490 = vmatprep.subr.mxu0 0.0
  %491 = vmatpush1.msra.mxu0 0.0
  %492 = vmatprep.subr.mxu0 0.0
  %493 = vmatpush1.msra.mxu0 0.0
  %494 = vmatprep.subr.mxu0 0.0
  %495 = vmatpush1.msra.mxu0 0.0
  %496 = vmatprep.subr.mxu0 0.0
  %497 = vmatpush1.msra.mxu0 0.0
  %498 = vmatprep.subr.mxu0 0.0
  %499 = vmatpush1.msra.mxu0 0.0
  %500 = vmatprep.subr.mxu0 0.0
  %501 = vmatpush1.msra.mxu0 0.0
  %502 = vmatprep.subr.mxu0 0.0
  %503 = vmatpush1.msra.mxu0 %v316
  %504 = vmatprep.subr.mxu0 0.0
  %505 = vmatpush1.msra.mxu0 %v306
  %506 = vmatprep.subr.mxu0 0.0
  %507 = vmatpush2.msra.mxu0 0.0
  %508 = vmatprep.subr.mxu0 0.0
  %509 = vmatpush2.msra.mxu0 0.0
  %510 = vmatprep.subr.mxu0 0.0
  %511 = vmatpush2.msra.mxu0 0.0
  %512 = vmatprep.subr.mxu0 0.0
  %513 = vmatpush2.msra.mxu0 0.0
  %514 = vmatprep.subr.mxu0 0.0
  %515 = vmatpush2.msra.mxu0 0.0
  %516 = vmatprep.subr.mxu0 0.0
  %517 = vmatpush2.msra.mxu0 0.0
  %518 = vmatprep.subr.mxu0 0.0
  %519 = vmatpush2.msra.mxu0 0.0
  %520 = vmatprep.subr.mxu0 0.0
  %521 = vmatpush2.msra.mxu0 0.0
  %522 = vmatprep.subr.mxu0 0.0
  %523 = vmatpush2.msra.mxu0 0.0
  %524 = vmatprep.subr.mxu0 0.0
  %525 = vmatpush2.msra.mxu0 0.0
  %526 = vmatprep.subr.mxu0 0.0
  %527 = vmatpush2.msra.mxu0 0.0
  %528 = vmatprep.subr.mxu0 0.0
  %529 = vmatpush2.msra.mxu0 0.0
  %530 = vmatprep.subr.mxu0 0.0
  %531 = vmatpush2.msra.mxu0 0.0
  %532 = vmatprep.subr.mxu0 0.0
  %533 = vmatpush2.msra.mxu0 0.0
  %534 = vmatprep.subr.mxu0 0.0
  %535 = vmatpush2.msra.mxu0 0.0
  %536 = vmatprep.subr.mxu0 0.0
  %537 = vmatpush2.msra.mxu0 0.0
  %538 = vmatprep.mubr.f32.mxu0 0.0
  %539 = vmatmul.mubr.f32.gmra.mxu0 %v219
  %v540 = vpop.f32.mrf.mxu0
  %v541 = vadd.f32 0.0, %v540
  %v542 = vpop.f32.mrf.mxu0
  %543 = vmatprep.mubr.f32.mxu0 0.0
  %544 = vmatmul.mubr.f32.gmra.mxu0 %v222
  %v545 = vpop.f32.mrf.mxu0
  %v546 = vadd.f32 0.0, %v545
  %v547 = vpop.f32.mrf.mxu0
  %548 = vdwg.mxu0
  %v549 = vadd.f32 %v472, %v541
  %v550 = vadd.f32 %v473, %v546
  %552 = vrot.lane.b32.xlu0 %v120, 127
  %v553 = vpop.permute.xlu0 %552
  %554 = vrot.lane.b32.xlu0 %v121, 127
  %v555 = vpop.permute.xlu0 %554
  %v557 = vsel %vm129, %v555, 0
  %559 = vmatprep.subr.mxu0 0.0
  %560 = vmatpush1.msra.mxu0 0.0
  %561 = vmatprep.subr.mxu0 0.0
  %562 = vmatpush1.msra.mxu0 0.0
  %563 = vmatprep.subr.mxu0 0.0
  %564 = vmatpush1.msra.mxu0 0.0
  %565 = vmatprep.subr.mxu0 0.0
  %566 = vmatpush1.msra.mxu0 0.0
  %567 = vmatprep.subr.mxu0 0.0
  %568 = vmatpush1.msra.mxu0 0.0
  %569 = vmatprep.subr.mxu0 0.0
  %570 = vmatpush1.msra.mxu0 0.0
  %571 = vmatprep.subr.mxu0 0.0
  %572 = vmatpush1.msra.mxu0 0.0
  %573 = vmatprep.subr.mxu0 0.0
  %574 = vmatpush1.msra.mxu0 0.0
  %575 = vmatprep.subr.mxu0 0.0
  %576 = vmatpush1.msra.mxu0 0.0
  %577 = vmatprep.subr.mxu0 0.0
  %578 = vmatpush1.msra.mxu0 0.0
  %579 = vmatprep.subr.mxu0 0.0
  %580 = vmatpush1.msra.mxu0 0.0
  %581 = vmatprep.subr.mxu0 0.0
  %582 = vmatpush1.msra.mxu0 0.0
  %583 = vmatprep.subr.mxu0 0.0
  %584 = vmatpush1.msra.mxu0 0.0
  %585 = vmatprep.subr.mxu0 0.0
  %586 = vmatpush1.msra.mxu0 0.0
  %587 = vmatprep.subr.mxu0 0.0
  %588 = vmatpush1.msra.mxu0 %v557
  %589 = vmatprep.subr.mxu0 0.0
  %590 = vmatpush1.msra.mxu0 %v553
  %591 = vmatprep.subr.mxu0 0.0
  %592 = vmatpush2.msra.mxu0 0.0
  %593 = vmatprep.subr.mxu0 0.0
  %594 = vmatpush2.msra.mxu0 0.0
  %595 = vmatprep.subr.mxu0 0.0
  %596 = vmatpush2.msra.mxu0 0.0
  %597 = vmatprep.subr.mxu0 0.0
  %598 = vmatpush2.msra.mxu0 0.0
  %599 = vmatprep.subr.mxu0 0.0
  %600 = vmatpush2.msra.mxu0 0.0
  %601 = vmatprep.subr.mxu0 0.0
  %602 = vmatpush2.msra.mxu0 0.0
  %603 = vmatprep.subr.mxu0 0.0
  %604 = vmatpush2.msra.mxu0 0.0
  %605 = vmatprep.subr.mxu0 0.0
  %606 = vmatpush2.msra.mxu0 0.0
  %607 = vmatprep.subr.mxu0 0.0
  %608 = vmatpush2.msra.mxu0 0.0
  %609 = vmatprep.subr.mxu0 0.0
  %610 = vmatpush2.msra.mxu0 0.0
  %611 = vmatprep.subr.mxu0 0.0
  %612 = vmatpush2.msra.mxu0 0.0
  %613 = vmatprep.subr.mxu0 0.0
  %614 = vmatpush2.msra.mxu0 0.0
  %615 = vmatprep.subr.mxu0 0.0
  %616 = vmatpush2.msra.mxu0 0.0
  %617 = vmatprep.subr.mxu0 0.0
  %618 = vmatpush2.msra.mxu0 0.0
  %619 = vmatprep.subr.mxu0 0.0
  %620 = vmatpush2.msra.mxu0 0.0
  %621 = vmatprep.subr.mxu0 0.0
  %622 = vmatpush2.msra.mxu0 0.0
  %623 = vmatprep.mubr.f32.mxu0 0.0
  %624 = vmatmul.mubr.f32.gmra.mxu0 %v311
  %v625 = vpop.f32.mrf.mxu0
  %v626 = vadd.f32 0.0, %v625
  %v627 = vpop.f32.mrf.mxu0
  %628 = vmatprep.mubr.f32.mxu0 0.0
  %629 = vmatmul.mubr.f32.gmra.mxu0 %v314
  %v630 = vpop.f32.mrf.mxu0
  %v631 = vadd.f32 0.0, %v630
  %v632 = vpop.f32.mrf.mxu0
  %633 = vdwg.mxu0
  %v634 = vadd.f32 %v549, %v626
  %v635 = vadd.f32 %v550, %v631
  %v636 = vmax.f32 %v634, 0.0
  %v637 = vmax.f32 %v635, 0.0
  %v638 = vmax.f32 %v395, %v636
  %v639 = vmax.f32 %v396, %v637
  %642 = vrot.lane.b32.xlu0 %v638, 127
  %v643 = vpop.permute.xlu0 %642
  %644 = vrot.lane.b32.xlu0 %v639, 127
  %v645 = vpop.permute.xlu0 %644
  %v648 = vmax.f32 %v638, %v643
  %v649 = vmax.f32 %v639, %v645
  %vm650 = vcmask 1022976
  %651 = vst.msk [vmem:[%s3] sm:$0xff] %vm650, %v648
  %vm652 = vcmask 1018880
  %653 = vst.msk [vmem:[%s3 + $0x8] sm:$0xf] %vm652, %v649
  %vm654 = vcmask 1048552
  %655 = vst.msk [vmem:[%s3] sm:$0xff] %vm654, 0.0
  %vm656 = vcmask 1044456
  %657 = vst.msk [vmem:[%s3 + $0x8] sm:$0xf] %vm656, 0.0
  // Predicated region
  $region14: #{cnn_block_forward.1} parent=0 // pred_check
    _
  $region15: #{cnn_block_forward.1} parent=0 // pred_check_branch
    %659 = sbr.rel (0) target = $region17
  $region16: #{cnn_block_forward.1} parent=0 // pred_region
    _
  $region17: #{cnn_block_forward.1} parent=0 // pred_fallthru
    _
  // Predicated region
  $region18: #{cnn_block_forward.1} parent=0 // pred_check
    _
  $region19: #{cnn_block_forward.1} parent=0 // pred_check_branch
    %661 = sbr.rel (0) target = $region21
  $region20: #{cnn_block_forward.1} parent=0 // pred_region
    _
  $region21: #{cnn_block_forward.1} parent=0 // pred_fallthru
    _

</llo_original>
